<compile_context>
chip_gen: v7x
topology: tpu7x:2x2x1
jax: 0.10.0
libtpu: 0.0.40
codegen_flags: <defaults>
</compile_context>

<pallas_src>
import functools
import math

import jax
import jax.numpy as jnp
import numpy as np
from jax.experimental import pallas as pl
from jax.experimental.pallas import tpu as pltpu

EPS = 1e-6
INV_SQRT2 = 1.0 / math.sqrt(2.0)
HIGH = jax.lax.Precision.HIGHEST
MXU_MIN_C = 9  # contractions with K <= 8 stay on the VPU (exact f32, MXU would idle)


def mlp_kernel(x_ref, ln_w_ref, ln_b_ref, w1_ref, b1_ref, w2_ref, b2_ref,
               scale_ref, o_ref, *, bt, use_mxu):
    ln_w = ln_w_ref[...]      # (C, 1)
    ln_b = ln_b_ref[...]      # (C, 1)
    w1 = w1_ref[...]          # (2C, C)
    b1 = b1_ref[...]          # (2C, 1)
    w2 = w2_ref[...]          # (C, 2C)
    b2 = b2_ref[...]          # (C, 1)
    scale = scale_ref[...]    # (C, 1)

    def conv1x1(v, w, b):
        # v: (Cin, T) lane-dense, w: (Cout, Cin), b: (Cout, 1)
        if use_mxu:
            # Explicit precision: multi-pass f32 on the MXU to match the
            # HIGHEST-precision reference.  For max throughput, cast w/v to
            # bf16 (1-pass MXU) and drop `precision=`.
            acc = jnp.dot(w, v, preferred_element_type=jnp.float32,
                          precision=HIGH)
        else:
            # Tiny K (<= 8): exact-f32 VPU outer-product accumulation.
            acc = w[:, 0:1] * v[0:1, :]
            for ci in range(1, w.shape[1]):
                acc = acc + w[:, ci:ci + 1] * v[ci:ci + 1, :]
        return acc + b

    # bt is a small static batch tile folded into the block to amortize the
    # ~0.35 us per-grid-step overhead when the spatial tile is tiny.
    for bi in range(bt):
        x = x_ref[bi]                                   # (C, T), T lane-dense

        # ---- LayerNorm over the channel (sublane) axis ----
        u = jnp.mean(x, axis=0, keepdims=True)          # (1, T)
        d = x - u
        s = jnp.mean(d * d, axis=0, keepdims=True)      # (1, T)
        xn = d * jax.lax.rsqrt(s + EPS)                 # EUP rsqrt
        xn = xn * ln_w + ln_b                           # per-channel affine

        # ---- fc1 (1x1 conv C -> 2C) ----
        y = conv1x1(xn, w1, b1)                         # (2C, T)

        # ---- exact (erf) GELU, matching torch.nn.GELU() default ----
        y = 0.5 * y * (1.0 + jax.lax.erf(y * INV_SQRT2))

        # ---- fc2 (1x1 conv 2C -> C) ----
        z = conv1x1(y, w2, b2)                          # (C, T)

        # ---- scale * out + shortcut ----
        o_ref[bi] = z * scale + x


def _round_up(v, m):
    return ((v + m - 1) // m) * m


def _bytes_per_step(bt, c, thw):
    """Conservative per-grid-step VMEM estimate (f32)."""
    f32 = 4
    blk = bt * c * thw * f32
    io = 2 * (2 * blk)                        # double-buffered in + out blocks
    inter = bt * thw * f32 * (6 * c)          # xn + y(2C) + gelu(2C) + z
    weights = 2 * 2 * (2 * c * c) * f32       # fc1 + fc2 weights, double-buffered
    return io + inter + weights


def _vmem_limit_bytes():
    """Scoped-VMEM request derived from the chip's physical capacity."""
    cap = 64 << 20  # conservative fallback (v7x per-TC VMEM)
    try:
        cap = int(getattr(pltpu.get_tpu_info(), "vmem_capacity_bytes", cap))
    except Exception:
        pass
    # Leave headroom for Mosaic internal scratch / spill.
    return int(min(cap * 3 // 4, 96 << 20))


def _plan_tiles(B, C, HW, budget):
    """Pick (batch_tile, spatial_tile, padded_HW) under a VMEM budget."""
    hw128 = max(128, _round_up(HW, 128))
    per128 = max(1, _bytes_per_step(1, C, 128))
    thw = min(hw128, 128 * max(1, budget // per128))
    thw = max(128, (thw // 128) * 128)
    hw_pad = _round_up(HW, thw)
    n_hw = hw_pad // thw

    # Prefer >= 2 grid steps so both TensorCores (v7x) get work.
    if B == 1 and n_hw == 1 and thw >= 256:
        thw = _round_up(thw // 2, 128)
        hw_pad = _round_up(HW, thw)
        n_hw = hw_pad // thw

    # Batch tile: amortize per-step overhead at small HW, keep >= 2 grid steps.
    bt = 1
    for cand in range(B, 0, -1):
        if B % cand:
            continue
        if _bytes_per_step(cand, C, thw) > budget:
            continue
        if (B // cand) * n_hw >= 2 or (B == 1 and n_hw == 1):
            bt = cand
            break
    return bt, thw, hw_pad


@jax.jit
def mlp_forward(x_nchw, params):
    """x_nchw: (B, C, H, W) float32 -> (B, C, H, W) float32."""
    B, C, H, W = x_nchw.shape
    HW = H * W
    C2 = 2 * C

    vmem_limit = _vmem_limit_bytes()
    bt, thw, hw_pad = _plan_tiles(B, C, HW, vmem_limit // 2)
    n_hw = hw_pad // thw
    grid = (B // bt, n_hw)

    x = x_nchw.reshape(B, C, HW).astype(jnp.float32)   # NCHW kept: HW lane-dense
    if hw_pad != HW:
        x = jnp.pad(x, ((0, 0), (0, 0), (0, hw_pad - HW)))

    ln_w = params["ln_w"].reshape(C, 1).astype(jnp.float32)
    ln_b = params["ln_b"].reshape(C, 1).astype(jnp.float32)
    w1 = params["fc1_w"].astype(jnp.float32)            # (2C, C)
    b1 = params["fc1_b"].reshape(C2, 1).astype(jnp.float32)
    w2 = params["fc2_w"].astype(jnp.float32)            # (C, 2C)
    b2 = params["fc2_b"].reshape(C, 1).astype(jnp.float32)
    scale = params["scale"].reshape(C, 1).astype(jnp.float32)

    kernel = functools.partial(mlp_kernel, bt=bt, use_mxu=(C >= MXU_MIN_C))

    def full_spec(shape):
        return pl.BlockSpec(shape, lambda b, t, _n=len(shape): (0,) * _n)

    out = pl.pallas_call(
        kernel,
        out_shape=jax.ShapeDtypeStruct((B, C, hw_pad), jnp.float32),
        grid_spec=pltpu.PrefetchScalarGridSpec(
            num_scalar_prefetch=0,
            grid=grid,
            in_specs=[
                pl.BlockSpec((bt, C, thw), lambda b, t: (b, 0, t)),
                full_spec((C, 1)), full_spec((C, 1)),
                full_spec((C2, C)), full_spec((C2, 1)),
                full_spec((C, C2)), full_spec((C, 1)),
                full_spec((C, 1)),
            ],
            out_specs=pl.BlockSpec((bt, C, thw), lambda b, t: (b, 0, t)),
        ),
        compiler_params=pltpu.CompilerParams(
            dimension_semantics=("parallel", "parallel"),
            vmem_limit_bytes=vmem_limit),
    )(x, ln_w, ln_b, w1, b1, w2, b2, scale)

    if hw_pad != HW:
        out = out[:, :, :HW]
    return out.reshape(B, C, H, W)


def reference_forward(x, P):
    """Pure-JAX reference mirroring the PyTorch MLP module (NCHW)."""
    u = x.mean(axis=1, keepdims=True)
    d = x - u
    s = (d * d).mean(axis=1, keepdims=True)
    xn = d / jnp.sqrt(s + EPS)
    xn = P["ln_w"][None, :, None, None] * xn + P["ln_b"][None, :, None, None]

    y = jnp.einsum("oc,bchw->bohw", P["fc1_w"], xn, precision=HIGH) \
        + P["fc1_b"][None, :, None, None]
    y = 0.5 * y * (1.0 + jax.lax.erf(y * INV_SQRT2))          # exact GELU
    z = jnp.einsum("oc,bchw->bohw", P["fc2_w"], y, precision=HIGH) \
        + P["fc2_b"][None, :, None, None]
    return z * P["scale"][None, :, None, None] + x


def init_params(key, C):
    ks = jax.random.split(key, 6)
    n = lambda k, shp: (0.1 * jax.random.normal(k, shp)).astype(jnp.float32)
    return {
        "ln_w": jnp.ones((C,), jnp.float32) + n(ks[0], (C,)),
        "ln_b": n(ks[1], (C,)),
        "fc1_w": n(ks[2], (2 * C, C)),      # Conv2d(C, 2C, 1) weight (out, in)
        "fc1_b": n(ks[3], (2 * C,)),
        "fc2_w": n(ks[4], (C, 2 * C)),      # Conv2d(2C, C, 1) weight (out, in)
        "fc2_b": n(ks[5], (C,)),
        # torch init is zeros (output == shortcut); use nonzero deterministic
        # values so the whole compute path is exercised/validated.
        "scale": jnp.linspace(-0.5, 0.5, C).astype(jnp.float32),
    }


if __name__ == "__main__":
    B, C, H, W = 2, 4, 16, 16
    key = jax.random.PRNGKey(0)
    kx, kp = jax.random.split(key)
    x = jax.random.normal(kx, (B, C, H, W), jnp.float32)
    params = init_params(kp, C)

    out = jax.block_until_ready(mlp_forward(x, params))
    ref = jax.block_until_ready(reference_forward(x, params))
    np.testing.assert_allclose(np.asarray(out), np.asarray(ref),
                               rtol=1e-4, atol=1e-5)
    print("KERNEL_OK")
</pallas_src>

<mosaic_0001>
module attributes {stable_mosaic.version = 11 : i64} {
  func.func @mlp_kernel(%arg0: i32, %arg1: i32, %arg2: memref<1x4x256xf32, #tpu.memory_space<vmem>>, %arg3: memref<4x1xf32, #tpu.memory_space<vmem>>, %arg4: memref<4x1xf32, #tpu.memory_space<vmem>>, %arg5: memref<8x4xf32, #tpu.memory_space<vmem>>, %arg6: memref<8x1xf32, #tpu.memory_space<vmem>>, %arg7: memref<4x8xf32, #tpu.memory_space<vmem>>, %arg8: memref<4x1xf32, #tpu.memory_space<vmem>>, %arg9: memref<4x1xf32, #tpu.memory_space<vmem>>, %arg10: memref<1x4x256xf32, #tpu.memory_space<vmem>>) attributes {dimension_semantics = [#tpu.dimension_semantics<parallel>, #tpu.dimension_semantics<parallel>], iteration_bounds = array<i64: 2, 1>, scalar_prefetch = 0 : i64, scratch_operands = 0 : i64, tpu.core_type = #tpu.core_type<tc>, window_params = [{transform_indices = @transform_0, window_bounds = array<i64: 1, 4, 256>}, {pipeline_mode = #tpu.pipeline_mode<synchronous>, transform_indices = @transform_1, window_bounds = array<i64: 4, 1>}, {pipeline_mode = #tpu.pipeline_mode<synchronous>, transform_indices = @transform_2, window_bounds = array<i64: 4, 1>}, {pipeline_mode = #tpu.pipeline_mode<synchronous>, transform_indices = @transform_3, window_bounds = array<i64: 8, 4>}, {pipeline_mode = #tpu.pipeline_mode<synchronous>, transform_indices = @transform_4, window_bounds = array<i64: 8, 1>}, {pipeline_mode = #tpu.pipeline_mode<synchronous>, transform_indices = @transform_5, window_bounds = array<i64: 4, 8>}, {pipeline_mode = #tpu.pipeline_mode<synchronous>, transform_indices = @transform_6, window_bounds = array<i64: 4, 1>}, {pipeline_mode = #tpu.pipeline_mode<synchronous>, transform_indices = @transform_7, window_bounds = array<i64: 4, 1>}, {transform_indices = @transform_8, window_bounds = array<i64: 1, 4, 256>}]} {
    %c0 = arith.constant 0 : index
    %c0_0 = arith.constant 0 : index
    %0 = vector.load %arg3[%c0, %c0_0] : memref<4x1xf32, #tpu.memory_space<vmem>>, vector<4x1xf32>
    %c0_1 = arith.constant 0 : index
    %c0_2 = arith.constant 0 : index
    %1 = vector.load %arg4[%c0_1, %c0_2] : memref<4x1xf32, #tpu.memory_space<vmem>>, vector<4x1xf32>
    %c0_3 = arith.constant 0 : index
    %c0_4 = arith.constant 0 : index
    %2 = vector.load %arg5[%c0_3, %c0_4] : memref<8x4xf32, #tpu.memory_space<vmem>>, vector<8x4xf32>
    %c0_5 = arith.constant 0 : index
    %c0_6 = arith.constant 0 : index
    %3 = vector.load %arg6[%c0_5, %c0_6] : memref<8x1xf32, #tpu.memory_space<vmem>>, vector<8x1xf32>
    %c0_7 = arith.constant 0 : index
    %c0_8 = arith.constant 0 : index
    %4 = vector.load %arg7[%c0_7, %c0_8] : memref<4x8xf32, #tpu.memory_space<vmem>>, vector<4x8xf32>
    %c0_9 = arith.constant 0 : index
    %c0_10 = arith.constant 0 : index
    %5 = vector.load %arg8[%c0_9, %c0_10] : memref<4x1xf32, #tpu.memory_space<vmem>>, vector<4x1xf32>
    %c0_11 = arith.constant 0 : index
    %c0_12 = arith.constant 0 : index
    %6 = vector.load %arg9[%c0_11, %c0_12] : memref<4x1xf32, #tpu.memory_space<vmem>>, vector<4x1xf32>
    %c0_13 = arith.constant 0 : index
    %c0_14 = arith.constant 0 : index
    %c0_15 = arith.constant 0 : index
    %7 = vector.load %arg2[%c0_13, %c0_14, %c0_15] : memref<1x4x256xf32, #tpu.memory_space<vmem>>, vector<1x4x256xf32>
    %8 = vector.shape_cast %7 : vector<1x4x256xf32> to vector<4x256xf32>
    %cst = arith.constant dense<0.000000e+00> : vector<256xf32>
    %9 = vector.multi_reduction <add>, %8, %cst [0] : vector<4x256xf32> to vector<256xf32>
    %10 = vector.shape_cast %9 : vector<256xf32> to vector<1x256xf32>
    %cst_16 = arith.constant 4.000000e+00 : f32
    %11 = vector.broadcast %cst_16 : f32 to vector<1x256xf32>
    %12 = arith.divf %10, %11 : vector<1x256xf32>
    %13 = vector.broadcast %12 : vector<1x256xf32> to vector<4x256xf32>
    %14 = arith.subf %8, %13 : vector<4x256xf32>
    %15 = arith.mulf %14, %14 : vector<4x256xf32>
    %cst_17 = arith.constant dense<0.000000e+00> : vector<256xf32>
    %16 = vector.multi_reduction <add>, %15, %cst_17 [0] : vector<4x256xf32> to vector<256xf32>
    %17 = vector.shape_cast %16 : vector<256xf32> to vector<1x256xf32>
    %cst_18 = arith.constant 4.000000e+00 : f32
    %18 = vector.broadcast %cst_18 : f32 to vector<1x256xf32>
    %19 = arith.divf %17, %18 : vector<1x256xf32>
    %cst_19 = arith.constant 9.99999997E-7 : f32
    %20 = vector.broadcast %cst_19 : f32 to vector<1x256xf32>
    %21 = arith.addf %19, %20 : vector<1x256xf32>
    %22 = math.rsqrt %21 : vector<1x256xf32>
    %23 = vector.broadcast %22 : vector<1x256xf32> to vector<4x256xf32>
    %24 = arith.mulf %14, %23 : vector<4x256xf32>
    %25 = vector.broadcast %0 : vector<4x1xf32> to vector<4x256xf32>
    %26 = arith.mulf %24, %25 : vector<4x256xf32>
    %27 = vector.broadcast %1 : vector<4x1xf32> to vector<4x256xf32>
    %28 = arith.addf %26, %27 : vector<4x256xf32>
    %29 = vector.extract_strided_slice %2 {offsets = [0, 0], sizes = [8, 1], strides = [1, 1]} : vector<8x4xf32> to vector<8x1xf32>
    %30 = vector.extract_strided_slice %28 {offsets = [0, 0], sizes = [1, 256], strides = [1, 1]} : vector<4x256xf32> to vector<1x256xf32>
    %31 = vector.broadcast %29 : vector<8x1xf32> to vector<8x256xf32>
    %32 = vector.broadcast %30 : vector<1x256xf32> to vector<8x256xf32>
    %33 = arith.mulf %31, %32 : vector<8x256xf32>
    %34 = vector.extract_strided_slice %2 {offsets = [0, 1], sizes = [8, 1], strides = [1, 1]} : vector<8x4xf32> to vector<8x1xf32>
    %35 = vector.extract_strided_slice %28 {offsets = [1, 0], sizes = [1, 256], strides = [1, 1]} : vector<4x256xf32> to vector<1x256xf32>
    %36 = vector.broadcast %34 : vector<8x1xf32> to vector<8x256xf32>
    %37 = vector.broadcast %35 : vector<1x256xf32> to vector<8x256xf32>
    %38 = arith.mulf %36, %37 : vector<8x256xf32>
    %39 = arith.addf %33, %38 : vector<8x256xf32>
    %40 = vector.extract_strided_slice %2 {offsets = [0, 2], sizes = [8, 1], strides = [1, 1]} : vector<8x4xf32> to vector<8x1xf32>
    %41 = vector.extract_strided_slice %28 {offsets = [2, 0], sizes = [1, 256], strides = [1, 1]} : vector<4x256xf32> to vector<1x256xf32>
    %42 = vector.broadcast %40 : vector<8x1xf32> to vector<8x256xf32>
    %43 = vector.broadcast %41 : vector<1x256xf32> to vector<8x256xf32>
    %44 = arith.mulf %42, %43 : vector<8x256xf32>
    %45 = arith.addf %39, %44 : vector<8x256xf32>
    %46 = vector.extract_strided_slice %2 {offsets = [0, 3], sizes = [8, 1], strides = [1, 1]} : vector<8x4xf32> to vector<8x1xf32>
    %47 = vector.extract_strided_slice %28 {offsets = [3, 0], sizes = [1, 256], strides = [1, 1]} : vector<4x256xf32> to vector<1x256xf32>
    %48 = vector.broadcast %46 : vector<8x1xf32> to vector<8x256xf32>
    %49 = vector.broadcast %47 : vector<1x256xf32> to vector<8x256xf32>
    %50 = arith.mulf %48, %49 : vector<8x256xf32>
    %51 = arith.addf %45, %50 : vector<8x256xf32>
    %52 = vector.broadcast %3 : vector<8x1xf32> to vector<8x256xf32>
    %53 = arith.addf %51, %52 : vector<8x256xf32>
    %cst_20 = arith.constant 5.000000e-01 : f32
    %54 = vector.broadcast %cst_20 : f32 to vector<8x256xf32>
    %55 = arith.mulf %54, %53 : vector<8x256xf32>
    %cst_21 = arith.constant 0.707106769 : f32
    %56 = vector.broadcast %cst_21 : f32 to vector<8x256xf32>
    %57 = arith.mulf %53, %56 : vector<8x256xf32>
    %58 = math.erf %57 : vector<8x256xf32>
    %cst_22 = arith.constant 1.000000e+00 : f32
    %59 = vector.broadcast %cst_22 : f32 to vector<8x256xf32>
    %60 = arith.addf %59, %58 : vector<8x256xf32>
    %61 = arith.mulf %55, %60 : vector<8x256xf32>
    %62 = vector.extract_strided_slice %4 {offsets = [0, 0], sizes = [4, 1], strides = [1, 1]} : vector<4x8xf32> to vector<4x1xf32>
    %63 = vector.extract_strided_slice %61 {offsets = [0, 0], sizes = [1, 256], strides = [1, 1]} : vector<8x256xf32> to vector<1x256xf32>
    %64 = vector.broadcast %62 : vector<4x1xf32> to vector<4x256xf32>
    %65 = vector.broadcast %63 : vector<1x256xf32> to vector<4x256xf32>
    %66 = arith.mulf %64, %65 : vector<4x256xf32>
    %67 = vector.extract_strided_slice %4 {offsets = [0, 1], sizes = [4, 1], strides = [1, 1]} : vector<4x8xf32> to vector<4x1xf32>
    %68 = vector.extract_strided_slice %61 {offsets = [1, 0], sizes = [1, 256], strides = [1, 1]} : vector<8x256xf32> to vector<1x256xf32>
    %69 = vector.broadcast %67 : vector<4x1xf32> to vector<4x256xf32>
    %70 = vector.broadcast %68 : vector<1x256xf32> to vector<4x256xf32>
    %71 = arith.mulf %69, %70 : vector<4x256xf32>
    %72 = arith.addf %66, %71 : vector<4x256xf32>
    %73 = vector.extract_strided_slice %4 {offsets = [0, 2], sizes = [4, 1], strides = [1, 1]} : vector<4x8xf32> to vector<4x1xf32>
    %74 = vector.extract_strided_slice %61 {offsets = [2, 0], sizes = [1, 256], strides = [1, 1]} : vector<8x256xf32> to vector<1x256xf32>
    %75 = vector.broadcast %73 : vector<4x1xf32> to vector<4x256xf32>
    %76 = vector.broadcast %74 : vector<1x256xf32> to vector<4x256xf32>
    %77 = arith.mulf %75, %76 : vector<4x256xf32>
    %78 = arith.addf %72, %77 : vector<4x256xf32>
    %79 = vector.extract_strided_slice %4 {offsets = [0, 3], sizes = [4, 1], strides = [1, 1]} : vector<4x8xf32> to vector<4x1xf32>
    %80 = vector.extract_strided_slice %61 {offsets = [3, 0], sizes = [1, 256], strides = [1, 1]} : vector<8x256xf32> to vector<1x256xf32>
    %81 = vector.broadcast %79 : vector<4x1xf32> to vector<4x256xf32>
    %82 = vector.broadcast %80 : vector<1x256xf32> to vector<4x256xf32>
    %83 = arith.mulf %81, %82 : vector<4x256xf32>
    %84 = arith.addf %78, %83 : vector<4x256xf32>
    %85 = vector.extract_strided_slice %4 {offsets = [0, 4], sizes = [4, 1], strides = [1, 1]} : vector<4x8xf32> to vector<4x1xf32>
    %86 = vector.extract_strided_slice %61 {offsets = [4, 0], sizes = [1, 256], strides = [1, 1]} : vector<8x256xf32> to vector<1x256xf32>
    %87 = vector.broadcast %85 : vector<4x1xf32> to vector<4x256xf32>
    %88 = vector.broadcast %86 : vector<1x256xf32> to vector<4x256xf32>
    %89 = arith.mulf %87, %88 : vector<4x256xf32>
    %90 = arith.addf %84, %89 : vector<4x256xf32>
    %91 = vector.extract_strided_slice %4 {offsets = [0, 5], sizes = [4, 1], strides = [1, 1]} : vector<4x8xf32> to vector<4x1xf32>
    %92 = vector.extract_strided_slice %61 {offsets = [5, 0], sizes = [1, 256], strides = [1, 1]} : vector<8x256xf32> to vector<1x256xf32>
    %93 = vector.broadcast %91 : vector<4x1xf32> to vector<4x256xf32>
    %94 = vector.broadcast %92 : vector<1x256xf32> to vector<4x256xf32>
    %95 = arith.mulf %93, %94 : vector<4x256xf32>
    %96 = arith.addf %90, %95 : vector<4x256xf32>
    %97 = vector.extract_strided_slice %4 {offsets = [0, 6], sizes = [4, 1], strides = [1, 1]} : vector<4x8xf32> to vector<4x1xf32>
    %98 = vector.extract_strided_slice %61 {offsets = [6, 0], sizes = [1, 256], strides = [1, 1]} : vector<8x256xf32> to vector<1x256xf32>
    %99 = vector.broadcast %97 : vector<4x1xf32> to vector<4x256xf32>
    %100 = vector.broadcast %98 : vector<1x256xf32> to vector<4x256xf32>
    %101 = arith.mulf %99, %100 : vector<4x256xf32>
    %102 = arith.addf %96, %101 : vector<4x256xf32>
    %103 = vector.extract_strided_slice %4 {offsets = [0, 7], sizes = [4, 1], strides = [1, 1]} : vector<4x8xf32> to vector<4x1xf32>
    %104 = vector.extract_strided_slice %61 {offsets = [7, 0], sizes = [1, 256], strides = [1, 1]} : vector<8x256xf32> to vector<1x256xf32>
    %105 = vector.broadcast %103 : vector<4x1xf32> to vector<4x256xf32>
    %106 = vector.broadcast %104 : vector<1x256xf32> to vector<4x256xf32>
    %107 = arith.mulf %105, %106 : vector<4x256xf32>
    %108 = arith.addf %102, %107 : vector<4x256xf32>
    %109 = vector.broadcast %5 : vector<4x1xf32> to vector<4x256xf32>
    %110 = arith.addf %108, %109 : vector<4x256xf32>
    %111 = vector.broadcast %6 : vector<4x1xf32> to vector<4x256xf32>
    %112 = arith.mulf %110, %111 : vector<4x256xf32>
    %113 = arith.addf %112, %8 : vector<4x256xf32>
    %c0_23 = arith.constant 0 : index
    %c0_24 = arith.constant 0 : index
    %c0_25 = arith.constant 0 : index
    %114 = vector.load %arg10[%c0_23, %c0_24, %c0_25] : memref<1x4x256xf32, #tpu.memory_space<vmem>>, vector<1x4x256xf32>
    %115 = vector.shape_cast %114 : vector<1x4x256xf32> to vector<4x256xf32>
    %116 = vector.shape_cast %113 : vector<4x256xf32> to vector<1x4x256xf32>
    tpu.vector_store %arg10[%c0_23, %c0_24, %c0_25], %116 {strides = array<i32>} : memref<1x4x256xf32, #tpu.memory_space<vmem>>, vector<1x4x256xf32>,
    return
  }
  func.func @transform_0(%arg0: i32, %arg1: i32) -> (i32, i32, i32) {
    %c0_i32 = arith.constant 0 : i32
    %c0_i32_0 = arith.constant 0 : i32
    return %arg0, %c0_i32, %arg1 : i32, i32, i32
  }
  func.func @transform_1(%arg0: i32, %arg1: i32) -> (i32, i32) {
    %c0_i32 = arith.constant 0 : i32
    %c0_i32_0 = arith.constant 0 : i32
    %c0_i32_1 = arith.constant 0 : i32
    return %c0_i32, %c0_i32_0 : i32, i32
  }
  func.func @transform_2(%arg0: i32, %arg1: i32) -> (i32, i32) {
    %c0_i32 = arith.constant 0 : i32
    %c0_i32_0 = arith.constant 0 : i32
    %c0_i32_1 = arith.constant 0 : i32
    return %c0_i32, %c0_i32_0 : i32, i32
  }
  func.func @transform_3(%arg0: i32, %arg1: i32) -> (i32, i32) {
    %c0_i32 = arith.constant 0 : i32
    %c0_i32_0 = arith.constant 0 : i32
    %c0_i32_1 = arith.constant 0 : i32
    return %c0_i32, %c0_i32_0 : i32, i32
  }
  func.func @transform_4(%arg0: i32, %arg1: i32) -> (i32, i32) {
    %c0_i32 = arith.constant 0 : i32
    %c0_i32_0 = arith.constant 0 : i32
    %c0_i32_1 = arith.constant 0 : i32
    return %c0_i32, %c0_i32_0 : i32, i32
  }
  func.func @transform_5(%arg0: i32, %arg1: i32) -> (i32, i32) {
    %c0_i32 = arith.constant 0 : i32
    %c0_i32_0 = arith.constant 0 : i32
    %c0_i32_1 = arith.constant 0 : i32
    return %c0_i32, %c0_i32_0 : i32, i32
  }
  func.func @transform_6(%arg0: i32, %arg1: i32) -> (i32, i32) {
    %c0_i32 = arith.constant 0 : i32
    %c0_i32_0 = arith.constant 0 : i32
    %c0_i32_1 = arith.constant 0 : i32
    return %c0_i32, %c0_i32_0 : i32, i32
  }
  func.func @transform_7(%arg0: i32, %arg1: i32) -> (i32, i32) {
    %c0_i32 = arith.constant 0 : i32
    %c0_i32_0 = arith.constant 0 : i32
    %c0_i32_1 = arith.constant 0 : i32
    return %c0_i32, %c0_i32_0 : i32, i32
  }
  func.func @transform_8(%arg0: i32, %arg1: i32) -> (i32, i32, i32) {
    %c0_i32 = arith.constant 0 : i32
    %c0_i32_0 = arith.constant 0 : i32
    return %arg0, %c0_i32, %arg1 : i32, i32, i32
  }
}

</mosaic_0001>

<llo_original>
// kernel: mlp_forward.1
$region0: #{mlp_forward.1}
  #allocation0 [shape = 'u32[]', space=smem, size = 0x4, offset = 0x4, fixed_abs, tag = 'smem constant byte address 0x4 - core index']
  #allocation1 [shape = 'u32[144,128]{1,0:T(1,128)}', space=vmem, size = 0x12000, scoped, tag = 'internal scratch']
  %s0 = inlined_call_operand.vmem [shape: f32[2,4,256], index: 0, kind: input, shape index: {}]
  %s1 = inlined_call_operand.vmem [shape: f32[4,1], index: 1, kind: input, shape index: {}]
  %s2 = inlined_call_operand.vmem [shape: f32[4,1], index: 2, kind: input, shape index: {}]
  %s3 = inlined_call_operand.vmem [shape: f32[8,4], index: 3, kind: input, shape index: {}]
  %s4 = inlined_call_operand.vmem [shape: f32[8,1], index: 4, kind: input, shape index: {}]
  %s5 = inlined_call_operand.vmem [shape: f32[4,8], index: 5, kind: input, shape index: {}]
  %s6 = inlined_call_operand.vmem [shape: f32[4,1], index: 6, kind: input, shape index: {}]
  %s7 = inlined_call_operand.vmem [shape: f32[4,1], index: 7, kind: input, shape index: {}]
  %s8 = inlined_call_operand.vmem [shape: f32[2,4,256], index: 8, kind: output, shape index: {}]
  %s9 = sld [smem:[#allocation0]]
  $region65: #{mlp_forward.1} parent=0
    _
  %s11 = ssub.s32 1, %s9
  %s12 = scalar_select 0, %s11, %s9
  loop: start=0, step=1, limit=4
  $region2: #{mlp_forward.1} parent=0 // loop_pre_header
    _
  $region3: #{mlp_forward.1} parent=0 // loop_header
    %s14 = sphi 0, %s18
    %p15 = scmp.ge.s32.totalorder %s14, 4
    %s21 = sphi 0, %s33
    %s22 = sphi 0, %s29
    %s23 = sphi 0, %s21
    %s24 = sphi 0, %s22
    %s25 = sphi 0, %s23
    %s26 = sphi 0, %s24
    %s38 = sphi 0, %s40
    %s41 = sphi 0, %s38
    %s42 = sphi 0, %s41
    %s58 = sphi 0, %s42
    %s62 = sphi 0, %s62
    %s64 = sphi 0, %s62
    %s65 = sphi 0, %s64
    %s79 = sphi 0, %s65
    %s83 = sphi 0, %s83
    %s85 = sphi 0, %s83
    %s86 = sphi 0, %s85
    %s100 = sphi 0, %s86
    %s104 = sphi 0, %s104
    %s106 = sphi 0, %s104
    %s107 = sphi 0, %s106
    %s121 = sphi 0, %s107
    %s125 = sphi 0, %s125
    %s127 = sphi 0, %s125
    %s128 = sphi 0, %s127
    %s142 = sphi 0, %s128
    %s146 = sphi 0, %s146
    %s148 = sphi 0, %s146
    %s149 = sphi 0, %s148
    %s163 = sphi 0, %s149
    %s167 = sphi 0, %s167
    %s169 = sphi 0, %s167
    %s170 = sphi 0, %s169
    %s184 = sphi 0, %s170
    %s188 = sphi 0, %s188
    %s190 = sphi 0, %s188
    %s191 = sphi 0, %s190
    %s205 = sphi 0, %s191
    %s213 = sphi 0, %s215
    %s216 = sphi 0, %s213
    %s217 = sphi 0, %s216
    %s233 = sphi 0, %s217
  $region4: #{mlp_forward.1} parent=0 // loop_header_branch
    %17 = sbr.rel (%p15) target = $region8
  $region5: #{mlp_forward.1} parent=0 // loop_body
    %s19 = ssub.s32 %s14, 1
    %s20 = ssub.s32 %s14, 2
    %s27 = sadd.s32 1, %s22
    %p28 = scmp.ge.s32.totalorder %s27, 1
    %s29 = scalar_select %p28, 0, %s27
    %s30 = sadd.s32 1, %s21
    %s31 = scalar_select %p28, %s30, %s21
    %p32 = scmp.ge.s32.totalorder %s31, 2
    %s33 = scalar_select %p32, 0, %s31
    %s34 = ssub.s32 %s21, %s33
    %s35 = ssub.s32 %s22, %s29
    %s36 = sor.u32 %s34, %s35
    %p37 = scmp.eq.s32.totalorder %s36, 0
    %s39 = sadd.s32 %s38, 1
    %s40 = scalar_select %p37, %s38, %s39
    %p43 = pneg %p37
    %p44 = scmp.eq.s32.totalorder %s14, 1
    %p45 = por %p43, %p44
    %p46 = scmp.ne.s32.totalorder %s38, %s41
    %p47 = scmp.eq.s32.totalorder %s14, 0
    %p48 = por %p46, %p47
    %p49 = scmp.ne.s32.totalorder %s38, %s41
    %p50 = scmp.eq.s32.totalorder %s19, 1
    %p51 = por %p49, %p50
    %p52 = scmp.ne.s32.totalorder %s41, %s42
    %p53 = scmp.eq.s32.totalorder %s19, 0
    %p54 = por %p52, %p53
    %p55 = scmp.ne.s32.totalorder %s41, %s42
    %p56 = scmp.eq.s32.totalorder %s20, 1
    %p57 = por %p55, %p56
    %p59 = scmp.ne.s32.totalorder %s42, %s58
    %p60 = scmp.eq.s32.totalorder %s20, 0
    %p61 = por %p59, %p60
    %s63 = sadd.s32 %s62, 1
    %p66 = scmp.eq.s32.totalorder %s14, 1
    %p67 = scmp.ne.s32.totalorder %s62, %s64
    %p68 = scmp.eq.s32.totalorder %s14, 0
    %p69 = por %p67, %p68
    %p70 = scmp.ne.s32.totalorder %s62, %s64
    %p71 = scmp.eq.s32.totalorder %s19, 1
    %p72 = por %p70, %p71
    %p73 = scmp.ne.s32.totalorder %s64, %s65
    %p74 = scmp.eq.s32.totalorder %s19, 0
    %p75 = por %p73, %p74
    %p76 = scmp.ne.s32.totalorder %s64, %s65
    %p77 = scmp.eq.s32.totalorder %s20, 1
    %p78 = por %p76, %p77
    %p80 = scmp.ne.s32.totalorder %s65, %s79
    %p81 = scmp.eq.s32.totalorder %s20, 0
    %p82 = por %p80, %p81
    %s84 = sadd.s32 %s83, 1
    %p87 = scmp.eq.s32.totalorder %s14, 1
    %p88 = scmp.ne.s32.totalorder %s83, %s85
    %p89 = scmp.eq.s32.totalorder %s14, 0
    %p90 = por %p88, %p89
    %p91 = scmp.ne.s32.totalorder %s83, %s85
    %p92 = scmp.eq.s32.totalorder %s19, 1
    %p93 = por %p91, %p92
    %p94 = scmp.ne.s32.totalorder %s85, %s86
    %p95 = scmp.eq.s32.totalorder %s19, 0
    %p96 = por %p94, %p95
    %p97 = scmp.ne.s32.totalorder %s85, %s86
    %p98 = scmp.eq.s32.totalorder %s20, 1
    %p99 = por %p97, %p98
    %p101 = scmp.ne.s32.totalorder %s86, %s100
    %p102 = scmp.eq.s32.totalorder %s20, 0
    %p103 = por %p101, %p102
    %s105 = sadd.s32 %s104, 1
    %p108 = scmp.eq.s32.totalorder %s14, 1
    %p109 = scmp.ne.s32.totalorder %s104, %s106
    %p110 = scmp.eq.s32.totalorder %s14, 0
    %p111 = por %p109, %p110
    %p112 = scmp.ne.s32.totalorder %s104, %s106
    %p113 = scmp.eq.s32.totalorder %s19, 1
    %p114 = por %p112, %p113
    %p115 = scmp.ne.s32.totalorder %s106, %s107
    %p116 = scmp.eq.s32.totalorder %s19, 0
    %p117 = por %p115, %p116
    %p118 = scmp.ne.s32.totalorder %s106, %s107
    %p119 = scmp.eq.s32.totalorder %s20, 1
    %p120 = por %p118, %p119
    %p122 = scmp.ne.s32.totalorder %s107, %s121
    %p123 = scmp.eq.s32.totalorder %s20, 0
    %p124 = por %p122, %p123
    %s126 = sadd.s32 %s125, 1
    %p129 = scmp.eq.s32.totalorder %s14, 1
    %p130 = scmp.ne.s32.totalorder %s125, %s127
    %p131 = scmp.eq.s32.totalorder %s14, 0
    %p132 = por %p130, %p131
    %p133 = scmp.ne.s32.totalorder %s125, %s127
    %p134 = scmp.eq.s32.totalorder %s19, 1
    %p135 = por %p133, %p134
    %p136 = scmp.ne.s32.totalorder %s127, %s128
    %p137 = scmp.eq.s32.totalorder %s19, 0
    %p138 = por %p136, %p137
    %p139 = scmp.ne.s32.totalorder %s127, %s128
    %p140 = scmp.eq.s32.totalorder %s20, 1
    %p141 = por %p139, %p140
    %p143 = scmp.ne.s32.totalorder %s128, %s142
    %p144 = scmp.eq.s32.totalorder %s20, 0
    %p145 = por %p143, %p144
    %s147 = sadd.s32 %s146, 1
    %p150 = scmp.eq.s32.totalorder %s14, 1
    %p151 = scmp.ne.s32.totalorder %s146, %s148
    %p152 = scmp.eq.s32.totalorder %s14, 0
    %p153 = por %p151, %p152
    %p154 = scmp.ne.s32.totalorder %s146, %s148
    %p155 = scmp.eq.s32.totalorder %s19, 1
    %p156 = por %p154, %p155
    %p157 = scmp.ne.s32.totalorder %s148, %s149
    %p158 = scmp.eq.s32.totalorder %s19, 0
    %p159 = por %p157, %p158
    %p160 = scmp.ne.s32.totalorder %s148, %s149
    %p161 = scmp.eq.s32.totalorder %s20, 1
    %p162 = por %p160, %p161
    %p164 = scmp.ne.s32.totalorder %s149, %s163
    %p165 = scmp.eq.s32.totalorder %s20, 0
    %p166 = por %p164, %p165
    %s168 = sadd.s32 %s167, 1
    %p171 = scmp.eq.s32.totalorder %s14, 1
    %p172 = scmp.ne.s32.totalorder %s167, %s169
    %p173 = scmp.eq.s32.totalorder %s14, 0
    %p174 = por %p172, %p173
    %p175 = scmp.ne.s32.totalorder %s167, %s169
    %p176 = scmp.eq.s32.totalorder %s19, 1
    %p177 = por %p175, %p176
    %p178 = scmp.ne.s32.totalorder %s169, %s170
    %p179 = scmp.eq.s32.totalorder %s19, 0
    %p180 = por %p178, %p179
    %p181 = scmp.ne.s32.totalorder %s169, %s170
    %p182 = scmp.eq.s32.totalorder %s20, 1
    %p183 = por %p181, %p182
    %p185 = scmp.ne.s32.totalorder %s170, %s184
    %p186 = scmp.eq.s32.totalorder %s20, 0
    %p187 = por %p185, %p186
    %s189 = sadd.s32 %s188, 1
    %p192 = scmp.eq.s32.totalorder %s14, 1
    %p193 = scmp.ne.s32.totalorder %s188, %s190
    %p194 = scmp.eq.s32.totalorder %s14, 0
    %p195 = por %p193, %p194
    %p196 = scmp.ne.s32.totalorder %s188, %s190
    %p197 = scmp.eq.s32.totalorder %s19, 1
    %p198 = por %p196, %p197
    %p199 = scmp.ne.s32.totalorder %s190, %s191
    %p200 = scmp.eq.s32.totalorder %s19, 0
    %p201 = por %p199, %p200
    %p202 = scmp.ne.s32.totalorder %s190, %s191
    %p203 = scmp.eq.s32.totalorder %s20, 1
    %p204 = por %p202, %p203
    %p206 = scmp.ne.s32.totalorder %s191, %s205
    %p207 = scmp.eq.s32.totalorder %s20, 0
    %p208 = por %p206, %p207
    %s209 = ssub.s32 %s21, %s33
    %s210 = ssub.s32 %s22, %s29
    %s211 = sor.u32 %s209, %s210
    %p212 = scmp.eq.s32.totalorder %s211, 0
    %s214 = sadd.s32 %s213, 1
    %s215 = scalar_select %p212, %s213, %s214
    %p218 = pneg %p212
    %p219 = scmp.eq.s32.totalorder %s14, 1
    %p220 = por %p218, %p219
    %p221 = scmp.ne.s32.totalorder %s213, %s216
    %p222 = scmp.eq.s32.totalorder %s14, 0
    %p223 = por %p221, %p222
    %p224 = scmp.ne.s32.totalorder %s213, %s216
    %p225 = scmp.eq.s32.totalorder %s19, 1
    %p226 = por %p224, %p225
    %p227 = scmp.ne.s32.totalorder %s216, %s217
    %p228 = scmp.eq.s32.totalorder %s19, 0
    %p229 = por %p227, %p228
    %p230 = scmp.ne.s32.totalorder %s216, %s217
    %p231 = scmp.eq.s32.totalorder %s20, 1
    %p232 = por %p230, %p231
    %p234 = scmp.ne.s32.totalorder %s217, %s233
    %p235 = scmp.eq.s32.totalorder %s20, 0
    %p236 = por %p234, %p235
    %p237 = scmp.le.s32.totalorder 1, %s14
    %p238 = scmp.lt.s32.totalorder %s14, 3
    %p239 = pnand %p237, %p238
    %p240 = pneg %p239
    // Predicated region
    $region9: #{mlp_forward.1} parent=5 // pred_check
      _
    $region10: #{mlp_forward.1} parent=5 // pred_check_branch
      %242 = sbr.rel (%p239) target = $region12
    $region11: #{mlp_forward.1} parent=5 // pred_region
      %s243 = ssub.s32 %s14, 1
      // Predicated region
      $region13: #{mlp_forward.1} parent=11 // pred_check
        %p244 = pneg %p75
      $region14: #{mlp_forward.1} parent=11 // pred_check_branch
        %246 = sbr.rel (%p244) target = $region16
      $region15: #{mlp_forward.1} parent=11 // pred_region
        _
      $region16: #{mlp_forward.1} parent=11 // pred_fallthru
        _
      // Predicated region
      $region17: #{mlp_forward.1} parent=11 // pred_check
        %p247 = pneg %p96
      $region18: #{mlp_forward.1} parent=11 // pred_check_branch
        %249 = sbr.rel (%p247) target = $region20
      $region19: #{mlp_forward.1} parent=11 // pred_region
        _
      $region20: #{mlp_forward.1} parent=11 // pred_fallthru
        _
      // Predicated region
      $region21: #{mlp_forward.1} parent=11 // pred_check
        %p250 = pneg %p117
      $region22: #{mlp_forward.1} parent=11 // pred_check_branch
        %252 = sbr.rel (%p250) target = $region24
      $region23: #{mlp_forward.1} parent=11 // pred_region
        _
      $region24: #{mlp_forward.1} parent=11 // pred_fallthru
        _
      // Predicated region
      $region25: #{mlp_forward.1} parent=11 // pred_check
        %p253 = pneg %p138
      $region26: #{mlp_forward.1} parent=11 // pred_check_branch
        %255 = sbr.rel (%p253) target = $region28
      $region27: #{mlp_forward.1} parent=11 // pred_region
        _
      $region28: #{mlp_forward.1} parent=11 // pred_fallthru
        _
      // Predicated region
      $region29: #{mlp_forward.1} parent=11 // pred_check
        %p256 = pneg %p159
      $region30: #{mlp_forward.1} parent=11 // pred_check_branch
        %258 = sbr.rel (%p256) target = $region32
      $region31: #{mlp_forward.1} parent=11 // pred_region
        _
      $region32: #{mlp_forward.1} parent=11 // pred_fallthru
        _
      // Predicated region
      $region33: #{mlp_forward.1} parent=11 // pred_check
        %p259 = pneg %p180
      $region34: #{mlp_forward.1} parent=11 // pred_check_branch
        %261 = sbr.rel (%p259) target = $region36
      $region35: #{mlp_forward.1} parent=11 // pred_region
        _
      $region36: #{mlp_forward.1} parent=11 // pred_fallthru
        _
      // Predicated region
      $region37: #{mlp_forward.1} parent=11 // pred_check
        %p262 = pneg %p201
      $region38: #{mlp_forward.1} parent=11 // pred_check_branch
        %264 = sbr.rel (%p262) target = $region40
      $region39: #{mlp_forward.1} parent=11 // pred_region
        _
      $region40: #{mlp_forward.1} parent=11 // pred_fallthru
        _
    $region12: #{mlp_forward.1} parent=5 // pred_fallthru
      _
    %p265 = scmp.lt.s32.totalorder %s14, 2
    // Predicated region
    $region41: #{mlp_forward.1} parent=5 // pred_check
      %p266 = pneg %p265
    $region42: #{mlp_forward.1} parent=5 // pred_check_branch
      %268 = sbr.rel (%p266) target = $region44
    $region43: #{mlp_forward.1} parent=5 // pred_region
      // Predicated region
      $region45: #{mlp_forward.1} parent=43 // pred_check
        %p269 = pneg %p48
      $region46: #{mlp_forward.1} parent=43 // pred_check_branch
        %271 = sbr.rel (%p269) target = $region48
      $region47: #{mlp_forward.1} parent=43 // pred_region
        %s272 = smul.u32 2, %s22
        %p273 = scmp.lt.s32.totalorder %s21, 1
        %s274 = scalar_select %p273, %s21, 1
        %p275 = scmp.lt.s32.totalorder %s272, 1
        %s276 = scalar_select %p275, %s272, 1
        %s277 = smul.addr %s274, 2
        %s278 = sadd.s32 %s276, %s277
        %s279 = smul.addr %s278, 4
        %s280 = scalar_lea.vmem %s0, %s279
        %s281 = smul.u32 2, %s22
      $region48: #{mlp_forward.1} parent=43 // pred_fallthru
        _
    $region44: #{mlp_forward.1} parent=5 // pred_fallthru
      _
    %p282 = scmp.le.s32.totalorder 1, %s14
    %p283 = scmp.lt.s32.totalorder %s14, 3
    %p284 = pnand %p282, %p283
    %p285 = pneg %p284
    // Predicated region
    $region49: #{mlp_forward.1} parent=5 // pred_check
      _
    $region50: #{mlp_forward.1} parent=5 // pred_check_branch
      %287 = sbr.rel (%p284) target = $region52
    $region51: #{mlp_forward.1} parent=5 // pred_region
      %s288 = ssub.s32 %s14, 1
      %s289 = smul.u32 2, %s24
      %p290 = scmp.lt.s32.totalorder %s23, 1
      %s291 = scalar_select %p290, %s23, 1
      %p292 = scmp.lt.s32.totalorder %s289, 1
      %s293 = scalar_select %p292, %s289, 1
      %s294 = smul.addr %s291, 2
      %s295 = sadd.s32 %s293, %s294
      %s296 = smul.addr %s295, 4
      %s297 = scalar_lea.vmem %s0, %s296
      %p298 = pneg %p54
      %p299 = pneg %p51
      %p300 = pneg %p75
      %p301 = pneg %p72
      %p302 = pneg %p96
      %p303 = pneg %p93
      %p304 = pneg %p117
      %p305 = pneg %p114
      %p306 = pneg %p138
      %p307 = pneg %p135
      %p308 = pneg %p159
      %p309 = pneg %p156
      %p310 = pneg %p180
      %p311 = pneg %p177
      %p312 = pneg %p201
      %p313 = pneg %p198
      %p314 = pneg %p229
      %p315 = pneg %p226
      %s316 = smul.u32 2, %s24
      %p317 = scmp.lt.s32.totalorder %s23, 1
      %s318 = scalar_select %p317, %s23, 1
      %p319 = scmp.lt.s32.totalorder %s316, 1
      %s320 = scalar_select %p319, %s316, 1
      %s321 = smul.addr %s318, 2
      %s322 = sadd.s32 %s320, %s321
      %s323 = smul.addr %s322, 4
      %s324 = scalar_lea.vmem %s8, %s323
      %s325 = smul.u32 2, %s24
      %p326 = scmp.lt.s32.totalorder %s23, 1
      %s327 = scalar_select %p326, %s23, 1
      %p328 = scmp.lt.s32.totalorder %s325, 1
      %s329 = scalar_select %p328, %s325, 1
      %s330 = smul.addr %s327, 2
      %s331 = sadd.s32 %s329, %s330
      %s332 = smul.addr %s331, 4
      %s333 = scalar_lea.vmem %s0, %s332
      %s334 = smul.u32 2, %s24
      %s335 = smul.u32 2, %s24
      %p336 = scmp.lt.s32.totalorder %s23, 1
      %s337 = scalar_select %p336, %s23, 1
      %p338 = scmp.lt.s32.totalorder %s335, 1
      %s339 = scalar_select %p338, %s335, 1
      %s340 = smul.addr %s337, 2
      %s341 = sadd.s32 %s339, %s340
      %s342 = smul.addr %s341, 4
      %s343 = scalar_lea.vmem %s8, %s342
      %s344 = smul.u32 2, %s24
      %v345 = vld [vmem:[%s1] sm:$0xf]
      %v346 = vld [vmem:[%s2] sm:$0xf]
      %v347 = vld [vmem:[%s3] sm:$0xff]
      %v348 = vld [vmem:[%s4] sm:$0xff]
      %v349 = vld [vmem:[%s5] sm:$0xf]
      %v350 = vld [vmem:[%s6] sm:$0xf]
      %v351 = vld [vmem:[%s7] sm:$0xf]
      %v352 = vld [vmem:[%s333] sm:$0xff]
      %v354 = vcombine.high %v352, %v352
      %vm356 = vcmask 1043456
      %v357 = vsel %vm356, %v352, 0.0
      %v358 = vrot.slane %v357, 4
      %v359 = vadd.f32 %v357, %v358
      %v360 = vrot.slane %v359, 2
      %v361 = vadd.f32 %v359, %v360
      %v362 = vrot.slane %v361, 1
      %v363 = vadd.f32 %v361, %v362
      %v364 = vsel %vm356, %v354, 0.0
      %v365 = vrot.slane %v364, 4
      %v366 = vadd.f32 %v364, %v365
      %v367 = vrot.slane %v366, 2
      %v368 = vadd.f32 %v366, %v367
      %v369 = vrot.slane %v368, 1
      %v370 = vadd.f32 %v368, %v369
      %v371 = vrcp.pop 4.0
      %v372 = vmul.f32 %v363, %v371
      %v373 = vmul.f32 %v370, %v371
      %v376 = vcombine.low %v372, %v373
      %v378 = vsub.f32 %v352, %v376
      %v379 = vmul.f32 %v378, %v378
      %v381 = vcombine.high %v379, %v379
      %v383 = vsel %vm356, %v379, 0.0
      %v384 = vrot.slane %v383, 4
      %v385 = vadd.f32 %v383, %v384
      %v386 = vrot.slane %v385, 2
      %v387 = vadd.f32 %v385, %v386
      %v388 = vrot.slane %v387, 1
      %v389 = vadd.f32 %v387, %v388
      %v390 = vsel %vm356, %v381, 0.0
      %v391 = vrot.slane %v390, 4
      %v392 = vadd.f32 %v390, %v391
      %v393 = vrot.slane %v392, 2
      %v394 = vadd.f32 %v392, %v393
      %v395 = vrot.slane %v394, 1
      %v396 = vadd.f32 %v394, %v395
      %v397 = vmul.f32 %v389, %v371
      %v398 = vmul.f32 %v396, %v371
      %v399 = vadd.f32 %v397, 1e-06
      %v400 = vadd.f32 %v398, 1e-06
      %v401 = vrsqrt.pop %v399
      %v402 = vrsqrt.pop %v400
      %v405 = vcombine.low %v401, %v402
      %v407 = vmul.f32 %v378, %v405
      %409 = vset.pattern.permute.xlu0 0
      %410 = vperm.xlu0 %409, %v345
      %v411 = vpop.permute.xlu0 %410
      %v413 = vunpack.c.l.s4 839922192
      %v414 = vunpack.c.0.s8 %v413
      %v415 = vlaneseq
      %v416 = vshrl.u32 %v415, 7
      %v417 = vsub.s32 %v414, %v416
      %v418 = vrot.slane %v411, %v417
      %v420 = vmul.f32 %v407, %v418
      %422 = vset.pattern.permute.xlu0 0
      %423 = vperm.xlu0 %422, %v346
      %v424 = vpop.permute.xlu0 %423
      %v426 = vunpack.c.l.s4 839922192
      %v427 = vunpack.c.0.s8 %v426
      %v428 = vlaneseq
      %v429 = vshrl.u32 %v428, 7
      %v430 = vsub.s32 %v427, %v429
      %v431 = vrot.slane %v424, %v430
      %v433 = vadd.f32 %v420, %v431
      %435 = vset.pattern.permute.xlu0 0
      %436 = vperm.xlu0 %435, %v347
      %v437 = vpop.permute.xlu0 %436
      %v440 = vlaneseq
      %v441 = vshrl.u32 %v440, 7
      %v442 = vsub.s32 0, %v441
      %v443 = vrot.slane %v433, %v442
      %v444 = vlaneseq
      %v445 = vshrl.u32 %v444, 7
      %v446 = vsub.s32 4, %v445
      %v447 = vrot.slane %v433, %v446
      %v450 = vlaneseq
      %v451 = vshrl.u32 %v450, 7
      %v452 = vsub.s32 0, %v451
      %v453 = vrot.slane %v443, %v452
      %v454 = vlaneseq
      %v455 = vshrl.u32 %v454, 7
      %v456 = vsub.s32 0, %v455
      %v457 = vrot.slane %v447, %v456
      %v458 = vmul.f32 %v437, %v453
      %v459 = vmul.f32 %v437, %v457
      %460 = vset.pattern.permute.xlu0 1
      %461 = vperm.xlu0 %460, %v347
      %v462 = vpop.permute.xlu0 %461
      %v464 = vlaneseq
      %v465 = vshrl.u32 %v464, 7
      %v466 = vsub.s32 1, %v465
      %v467 = vrot.slane %v433, %v466
      %v468 = vlaneseq
      %v469 = vshrl.u32 %v468, 7
      %v470 = vsub.s32 5, %v469
      %v471 = vrot.slane %v433, %v470
      %v474 = vlaneseq
      %v475 = vshrl.u32 %v474, 7
      %v476 = vsub.s32 1, %v475
      %v477 = vrot.slane %v467, %v476
      %v478 = vlaneseq
      %v479 = vshrl.u32 %v478, 7
      %v480 = vsub.s32 1, %v479
      %v481 = vrot.slane %v471, %v480
      %v482 = vmul.f32 %v462, %v477
      %v483 = vmul.f32 %v462, %v481
      %v484 = vadd.f32 %v458, %v482
      %v485 = vadd.f32 %v459, %v483
      %486 = vset.pattern.permute.xlu0 2
      %487 = vperm.xlu0 %486, %v347
      %v488 = vpop.permute.xlu0 %487
      %v490 = vlaneseq
      %v491 = vshrl.u32 %v490, 7
      %v492 = vsub.s32 2, %v491
      %v493 = vrot.slane %v433, %v492
      %v494 = vlaneseq
      %v495 = vshrl.u32 %v494, 7
      %v496 = vsub.s32 6, %v495
      %v497 = vrot.slane %v433, %v496
      %v500 = vlaneseq
      %v501 = vshrl.u32 %v500, 7
      %v502 = vsub.s32 2, %v501
      %v503 = vrot.slane %v493, %v502
      %v504 = vlaneseq
      %v505 = vshrl.u32 %v504, 7
      %v506 = vsub.s32 2, %v505
      %v507 = vrot.slane %v497, %v506
      %v508 = vmul.f32 %v488, %v503
      %v509 = vmul.f32 %v488, %v507
      %v510 = vadd.f32 %v484, %v508
      %v511 = vadd.f32 %v485, %v509
      %512 = vset.pattern.permute.xlu0 3
      %513 = vperm.xlu0 %512, %v347
      %v514 = vpop.permute.xlu0 %513
      %v516 = vlaneseq
      %v517 = vshrl.u32 %v516, 7
      %v518 = vsub.s32 3, %v517
      %v519 = vrot.slane %v433, %v518
      %v520 = vlaneseq
      %v521 = vshrl.u32 %v520, 7
      %v522 = vsub.s32 7, %v521
      %v523 = vrot.slane %v433, %v522
      %v526 = vlaneseq
      %v527 = vshrl.u32 %v526, 7
      %v528 = vsub.s32 3, %v527
      %v529 = vrot.slane %v519, %v528
      %v530 = vlaneseq
      %v531 = vshrl.u32 %v530, 7
      %v532 = vsub.s32 3, %v531
      %v533 = vrot.slane %v523, %v532
      %v534 = vmul.f32 %v514, %v529
      %v535 = vmul.f32 %v514, %v533
      %v536 = vadd.f32 %v510, %v534
      %v537 = vadd.f32 %v511, %v535
      %539 = vset.pattern.permute.xlu0 0
      %540 = vperm.xlu0 %539, %v348
      %v541 = vpop.permute.xlu0 %540
      %v543 = vadd.f32 %v536, %v541
      %v544 = vadd.f32 %v537, %v541
      %v545 = vmul.f32 %v543, 0.5
      %v546 = vmul.f32 %v544, 0.5
      %v547 = vmul.f32 %v543, 0.70710677
      %v548 = vmul.f32 %v544, 0.70710677
      %v549 = verf.f32.pop %v547
      %v550 = verf.f32.pop %v548
      %v551 = vadd.f32 %v549, 1.0
      %v552 = vadd.f32 %v550, 1.0
      %v553 = vmul.f32 %v545, %v551
      %v554 = vmul.f32 %v546, %v552
      %556 = vset.pattern.permute.xlu0 0
      %557 = vperm.xlu0 %556, %v349
      %v558 = vpop.permute.xlu0 %557
      %v560 = vlaneseq
      %v561 = vshrl.u32 %v560, 7
      %v562 = vsub.s32 0, %v561
      %v563 = vrot.slane %v553, %v562
      %v564 = vlaneseq
      %v565 = vshrl.u32 %v564, 7
      %v566 = vsub.s32 0, %v565
      %v567 = vrot.slane %v554, %v566
      %v568 = vmul.f32 %v558, %v563
      %v569 = vmul.f32 %v558, %v567
      %570 = vset.pattern.permute.xlu0 1
      %571 = vperm.xlu0 %570, %v349
      %v572 = vpop.permute.xlu0 %571
      %v574 = vlaneseq
      %v575 = vshrl.u32 %v574, 7
      %v576 = vsub.s32 1, %v575
      %v577 = vrot.slane %v553, %v576
      %v578 = vlaneseq
      %v579 = vshrl.u32 %v578, 7
      %v580 = vsub.s32 1, %v579
      %v581 = vrot.slane %v554, %v580
      %v582 = vmul.f32 %v572, %v577
      %v583 = vmul.f32 %v572, %v581
      %v584 = vadd.f32 %v568, %v582
      %v585 = vadd.f32 %v569, %v583
      %586 = vset.pattern.permute.xlu0 2
      %587 = vperm.xlu0 %586, %v349
      %v588 = vpop.permute.xlu0 %587
      %v590 = vlaneseq
      %v591 = vshrl.u32 %v590, 7
      %v592 = vsub.s32 2, %v591
      %v593 = vrot.slane %v553, %v592
      %v594 = vlaneseq
      %v595 = vshrl.u32 %v594, 7
      %v596 = vsub.s32 2, %v595
      %v597 = vrot.slane %v554, %v596
      %v598 = vmul.f32 %v588, %v593
      %v599 = vmul.f32 %v588, %v597
      %v600 = vadd.f32 %v584, %v598
      %v601 = vadd.f32 %v585, %v599
      %602 = vset.pattern.permute.xlu0 3
      %603 = vperm.xlu0 %602, %v349
      %v604 = vpop.permute.xlu0 %603
      %v606 = vlaneseq
      %v607 = vshrl.u32 %v606, 7
      %v608 = vsub.s32 3, %v607
      %v609 = vrot.slane %v553, %v608
      %v610 = vlaneseq
      %v611 = vshrl.u32 %v610, 7
      %v612 = vsub.s32 3, %v611
      %v613 = vrot.slane %v554, %v612
      %v614 = vmul.f32 %v604, %v609
      %v615 = vmul.f32 %v604, %v613
      %v616 = vadd.f32 %v600, %v614
      %v617 = vadd.f32 %v601, %v615
      %618 = vset.pattern.permute.xlu0 4
      %619 = vperm.xlu0 %618, %v349
      %v620 = vpop.permute.xlu0 %619
      %v622 = vlaneseq
      %v623 = vshrl.u32 %v622, 7
      %v624 = vsub.s32 4, %v623
      %v625 = vrot.slane %v553, %v624
      %v626 = vlaneseq
      %v627 = vshrl.u32 %v626, 7
      %v628 = vsub.s32 4, %v627
      %v629 = vrot.slane %v554, %v628
      %v630 = vmul.f32 %v620, %v625
      %v631 = vmul.f32 %v620, %v629
      %v632 = vadd.f32 %v616, %v630
      %v633 = vadd.f32 %v617, %v631
      %634 = vset.pattern.permute.xlu0 5
      %635 = vperm.xlu0 %634, %v349
      %v636 = vpop.permute.xlu0 %635
      %v638 = vlaneseq
      %v639 = vshrl.u32 %v638, 7
      %v640 = vsub.s32 5, %v639
      %v641 = vrot.slane %v553, %v640
      %v642 = vlaneseq
      %v643 = vshrl.u32 %v642, 7
      %v644 = vsub.s32 5, %v643
      %v645 = vrot.slane %v554, %v644
      %v646 = vmul.f32 %v636, %v641
      %v647 = vmul.f32 %v636, %v645
      %v648 = vadd.f32 %v632, %v646
      %v649 = vadd.f32 %v633, %v647
      %650 = vset.pattern.permute.xlu0 6
      %651 = vperm.xlu0 %650, %v349
      %v652 = vpop.permute.xlu0 %651
      %v654 = vlaneseq
      %v655 = vshrl.u32 %v654, 7
      %v656 = vsub.s32 6, %v655
      %v657 = vrot.slane %v553, %v656
      %v658 = vlaneseq
      %v659 = vshrl.u32 %v658, 7
      %v660 = vsub.s32 6, %v659
      %v661 = vrot.slane %v554, %v660
      %v662 = vmul.f32 %v652, %v657
      %v663 = vmul.f32 %v652, %v661
      %v664 = vadd.f32 %v648, %v662
      %v665 = vadd.f32 %v649, %v663
      %666 = vset.pattern.permute.xlu0 7
      %667 = vperm.xlu0 %666, %v349
      %v668 = vpop.permute.xlu0 %667
      %v670 = vlaneseq
      %v671 = vshrl.u32 %v670, 7
      %v672 = vsub.s32 7, %v671
      %v673 = vrot.slane %v553, %v672
      %v674 = vlaneseq
      %v675 = vshrl.u32 %v674, 7
      %v676 = vsub.s32 7, %v675
      %v677 = vrot.slane %v554, %v676
      %v678 = vmul.f32 %v668, %v673
      %v679 = vmul.f32 %v668, %v677
      %v680 = vadd.f32 %v664, %v678
      %v681 = vadd.f32 %v665, %v679
      %683 = vset.pattern.permute.xlu0 0
      %684 = vperm.xlu0 %683, %v350
      %v685 = vpop.permute.xlu0 %684
      %v687 = vadd.f32 %v680, %v685
      %v688 = vadd.f32 %v681, %v685
      %690 = vset.pattern.permute.xlu0 0
      %691 = vperm.xlu0 %690, %v351
      %v692 = vpop.permute.xlu0 %691
      %v694 = vmul.f32 %v687, %v692
      %v695 = vmul.f32 %v688, %v692
      %v696 = vadd.f32 %v694, %v352
      %v697 = vadd.f32 %v695, %v354
      %v700 = vcombine.low %v696, %v697
      %702 = vst [vmem:[%s343] sm:$0xff] %v700
      %s703 = smul.u32 2, %s24
      %p704 = scmp.lt.s32.totalorder %s23, 1
      %s705 = scalar_select %p704, %s23, 1
      %p706 = scmp.lt.s32.totalorder %s703, 1
      %s707 = scalar_select %p706, %s703, 1
      %s708 = smul.addr %s705, 2
      %s709 = sadd.s32 %s707, %s708
      %s710 = smul.addr %s709, 4
      %s711 = scalar_lea.vmem %s8, %s710
      // Predicated region
      $region53: #{mlp_forward.1} parent=51 // pred_check
        %p712 = pneg %p226
      $region54: #{mlp_forward.1} parent=51 // pred_check_branch
        %714 = sbr.rel (%p712) target = $region56
      $region55: #{mlp_forward.1} parent=51 // pred_region
        %s715 = smul.u32 2, %s24
      $region56: #{mlp_forward.1} parent=51 // pred_fallthru
        _
    $region52: #{mlp_forward.1} parent=5 // pred_fallthru
      _
    %p716 = scmp.le.s32.totalorder 2, %s14
    // Predicated region
    $region57: #{mlp_forward.1} parent=5 // pred_check
      %p717 = pneg %p716
    $region58: #{mlp_forward.1} parent=5 // pred_check_branch
      %719 = sbr.rel (%p717) target = $region60
    $region59: #{mlp_forward.1} parent=5 // pred_region
      %s720 = ssub.s32 %s14, 2
      // Predicated region
      $region61: #{mlp_forward.1} parent=59 // pred_check
        %p721 = pneg %p232
      $region62: #{mlp_forward.1} parent=59 // pred_check_branch
        %723 = sbr.rel (%p721) target = $region64
      $region63: #{mlp_forward.1} parent=59 // pred_region
        %s724 = smul.u32 2, %s26
        %p725 = scmp.lt.s32.totalorder %s25, 1
        %s726 = scalar_select %p725, %s25, 1
        %p727 = scmp.lt.s32.totalorder %s724, 1
        %s728 = scalar_select %p727, %s724, 1
        %s729 = smul.addr %s726, 2
        %s730 = sadd.s32 %s728, %s729
        %s731 = smul.addr %s730, 4
        %s732 = scalar_lea.vmem %s8, %s731
      $region64: #{mlp_forward.1} parent=59 // pred_fallthru
        _
    $region60: #{mlp_forward.1} parent=5 // pred_fallthru
      _
  $region6: #{mlp_forward.1} parent=0 // loop_footer
    %s18 = sadd.s32 1, %s14
  $region7: #{mlp_forward.1} parent=0 // loop_footer_branch
    %13 = sbr.rel target = $region3
  $region8: #{mlp_forward.1} parent=0 // loop_exit
    _

</llo_original>
